<compile_context>
chip_gen: v5e
topology: v5e:2x2
jax: 0.10.0
libtpu: 0.0.40
codegen_flags: <defaults>
</compile_context>

<pallas_src>
from functools import partial

import jax
import jax.numpy as jnp
from jax.experimental import pallas as pl
from jax.experimental.pallas import tpu as pltpu


def _add_kernel(a_ref, b_ref, o_ref):
    # Pure elementwise add on the full (lane-dense) tile — VPU only.
    o_ref[...] = a_ref[...] + b_ref[...]


def _lane_dense_shape(n):
    """Return (pad, (8, padded_n // 8)) — always 8 full sublanes."""
    pad = (-n) % 8
    n_pad = n + pad
    return pad, (8, n_pad // 8)


@partial(jax.jit, donate_argnums=(0,))
def pallas_add(x135, x121):
    # NOTE: x135 is donated — its buffer is reused for the result. Callers
    # must not read x135 after this call.
    assert x135.shape == x121.shape and x135.dtype == x121.dtype
    orig_shape = x135.shape
    n = x135.size
    pad, flat_shape = _lane_dense_shape(n)

    a = x135.reshape(-1)
    b = x121.reshape(-1)
    if pad:
        # Untested for the (1,112,14,14) shape (n % 8 == 0); keeps every
        # other flat length lane-dense instead of falling back to (1, n).
        a = jnp.pad(a, (0, pad))
        b = jnp.pad(b, (0, pad))
    a = a.reshape(flat_shape)
    b = b.reshape(flat_shape)

    elem_bytes = jnp.dtype(x135.dtype).itemsize
    out2d = pl.pallas_call(
        _add_kernel,
        out_shape=jax.ShapeDtypeStruct(flat_shape, x135.dtype),
        in_specs=[
            pl.BlockSpec(memory_space=pltpu.VMEM),
            pl.BlockSpec(memory_space=pltpu.VMEM),
        ],
        out_specs=pl.BlockSpec(memory_space=pltpu.VMEM),
        # Result overwrites the first operand's (donated) buffer in place.
        input_output_aliases={0: 0},
        cost_estimate=pl.CostEstimate(
            flops=n, bytes_accessed=3 * elem_bytes * n, transcendentals=0
        ),
    )(a, b)

    out = out2d.reshape(-1)
    if pad:
        out = out[:n]
    return out.reshape(orig_shape)


if __name__ == "__main__":
    key = jax.random.PRNGKey(0)
    k1, k2 = jax.random.split(key)
    # Shapes from the module's forward: [1, 112, 14, 14].
    shape = (1, 112, 14, 14)
    x135 = jax.random.normal(k1, shape, dtype=jnp.float32)
    x121 = jax.random.normal(k2, shape, dtype=jnp.float32)

    # x135 is donated to the kernel call, so compute the reference first.
    ref = x135 + x121
    ref = jax.block_until_ready(ref)

    out = pallas_add(x135, x121)
    out = jax.block_until_ready(out)

    assert out.shape == shape
    assert jnp.allclose(out, ref, atol=1e-6, rtol=1e-6)
    print("KERNEL_OK")
</pallas_src>

<mosaic_0001>
module attributes {stable_mosaic.version = 11 : i64} {
  func.func @_add_kernel(%arg0: memref<8x2744xf32, #tpu.memory_space<vmem>>, %arg1: memref<8x2744xf32, #tpu.memory_space<vmem>>, %arg2: memref<8x2744xf32, #tpu.memory_space<vmem>>) attributes {dimension_semantics = [], scalar_prefetch = 0 : i64, scratch_operands = 0 : i64, tpu.core_type = #tpu.core_type<tc>} {
    %c0 = arith.constant 0 : index
    %c0_0 = arith.constant 0 : index
    %0 = vector.load %arg0[%c0, %c0_0] : memref<8x2744xf32, #tpu.memory_space<vmem>>, vector<8x2744xf32>
    %c0_1 = arith.constant 0 : index
    %c0_2 = arith.constant 0 : index
    %1 = vector.load %arg1[%c0_1, %c0_2] : memref<8x2744xf32, #tpu.memory_space<vmem>>, vector<8x2744xf32>
    %2 = arith.addf %0, %1 : vector<8x2744xf32>
    %c0_3 = arith.constant 0 : index
    %c0_4 = arith.constant 0 : index
    %3 = vector.load %arg2[%c0_3, %c0_4] : memref<8x2744xf32, #tpu.memory_space<vmem>>, vector<8x2744xf32>
    tpu.vector_store %arg2[%c0_3, %c0_4], %2 {strides = array<i32>} : memref<8x2744xf32, #tpu.memory_space<vmem>>, vector<8x2744xf32>,
    return
  }
}

</mosaic_0001>

<llo_original>
// kernel: pallas_add.1
$region0: #{pallas_add.1}
  #allocation0 [shape = 'u32[]', space=smem, size = 0x4, offset = 0x4, fixed_abs, tag = 'smem constant byte address 0x4 - core index']
  #allocation1 [shape = 'u32[72,128]{1,0:T(1,128)}', space=vmem, size = 0x9000, scoped, tag = 'internal scratch']
  %s0 = inlined_call_operand.vmem [shape: f32[8,2744], index: 0, kind: input, shape index: {}, may-alias: {0,2}]
  %s1 = inlined_call_operand.vmem [shape: f32[8,2744], index: 1, kind: input, shape index: {}]
  %s2 = inlined_call_operand.vmem [shape: f32[8,2744], index: 2, kind: output, shape index: {}, may-alias: {0,2}]
  %s3 = sld [smem:[#allocation0]]
  $region18: #{pallas_add.1} parent=0
    _
  %s5 = ssub.s32 1, %s3
  %s6 = scalar_select 0, %s5, %s3
  // Predicated region
  $region2: #{pallas_add.1} parent=0 // pred_check
    _
  $region3: #{pallas_add.1} parent=0 // pred_check_branch
    %8 = sbr.rel (0) target = $region5
  $region4: #{pallas_add.1} parent=0 // pred_region
    _
  $region5: #{pallas_add.1} parent=0 // pred_fallthru
    _
  // Predicated region
  $region6: #{pallas_add.1} parent=0 // pred_check
    _
  $region7: #{pallas_add.1} parent=0 // pred_check_branch
    %10 = sbr.rel (0) target = $region9
  $region8: #{pallas_add.1} parent=0 // pred_region
    _
  $region9: #{pallas_add.1} parent=0 // pred_fallthru
    _
  %v11 = vld [vmem:[%s0] sm:$0xff]
  %v12 = vld [vmem:[%s0 + $0x8] sm:$0xff]
  %v13 = vld [vmem:[%s0 + $0x10] sm:$0xff]
  %v14 = vld [vmem:[%s0 + $0x18] sm:$0xff]
  %v15 = vld [vmem:[%s0 + $0x20] sm:$0xff]
  %v16 = vld [vmem:[%s0 + $0x28] sm:$0xff]
  %v17 = vld [vmem:[%s0 + $0x30] sm:$0xff]
  %v18 = vld [vmem:[%s0 + $0x38] sm:$0xff]
  %v19 = vld [vmem:[%s0 + $0x40] sm:$0xff]
  %v20 = vld [vmem:[%s0 + $0x48] sm:$0xff]
  %v21 = vld [vmem:[%s0 + $0x50] sm:$0xff]
  %v22 = vld [vmem:[%s0 + $0x58] sm:$0xff]
  %v23 = vld [vmem:[%s0 + $0x60] sm:$0xff]
  %v24 = vld [vmem:[%s0 + $0x68] sm:$0xff]
  %v25 = vld [vmem:[%s0 + $0x70] sm:$0xff]
  %v26 = vld [vmem:[%s0 + $0x78] sm:$0xff]
  %v27 = vld [vmem:[%s0 + $0x80] sm:$0xff]
  %v28 = vld [vmem:[%s0 + $0x88] sm:$0xff]
  %v29 = vld [vmem:[%s0 + $0x90] sm:$0xff]
  %v30 = vld [vmem:[%s0 + $0x98] sm:$0xff]
  %v31 = vld [vmem:[%s0 + $0xa0] sm:$0xff]
  %v32 = vld [vmem:[%s0 + $0xa8] sm:$0xff]
  %v33 = vld [vmem:[%s1] sm:$0xff]
  %v34 = vld [vmem:[%s1 + $0x8] sm:$0xff]
  %v35 = vld [vmem:[%s1 + $0x10] sm:$0xff]
  %v36 = vld [vmem:[%s1 + $0x18] sm:$0xff]
  %v37 = vld [vmem:[%s1 + $0x20] sm:$0xff]
  %v38 = vld [vmem:[%s1 + $0x28] sm:$0xff]
  %v39 = vld [vmem:[%s1 + $0x30] sm:$0xff]
  %v40 = vld [vmem:[%s1 + $0x38] sm:$0xff]
  %v41 = vld [vmem:[%s1 + $0x40] sm:$0xff]
  %v42 = vld [vmem:[%s1 + $0x48] sm:$0xff]
  %v43 = vld [vmem:[%s1 + $0x50] sm:$0xff]
  %v44 = vld [vmem:[%s1 + $0x58] sm:$0xff]
  %v45 = vld [vmem:[%s1 + $0x60] sm:$0xff]
  %v46 = vld [vmem:[%s1 + $0x68] sm:$0xff]
  %v47 = vld [vmem:[%s1 + $0x70] sm:$0xff]
  %v48 = vld [vmem:[%s1 + $0x78] sm:$0xff]
  %v49 = vld [vmem:[%s1 + $0x80] sm:$0xff]
  %v50 = vld [vmem:[%s1 + $0x88] sm:$0xff]
  %v51 = vld [vmem:[%s1 + $0x90] sm:$0xff]
  %v52 = vld [vmem:[%s1 + $0x98] sm:$0xff]
  %v53 = vld [vmem:[%s1 + $0xa0] sm:$0xff]
  %v54 = vld [vmem:[%s1 + $0xa8] sm:$0xff]
  %v55 = vadd.f32 %v11, %v33
  %v56 = vadd.f32 %v12, %v34
  %v57 = vadd.f32 %v13, %v35
  %v58 = vadd.f32 %v14, %v36
  %v59 = vadd.f32 %v15, %v37
  %v60 = vadd.f32 %v16, %v38
  %v61 = vadd.f32 %v17, %v39
  %v62 = vadd.f32 %v18, %v40
  %v63 = vadd.f32 %v19, %v41
  %v64 = vadd.f32 %v20, %v42
  %v65 = vadd.f32 %v21, %v43
  %v66 = vadd.f32 %v22, %v44
  %v67 = vadd.f32 %v23, %v45
  %v68 = vadd.f32 %v24, %v46
  %v69 = vadd.f32 %v25, %v47
  %v70 = vadd.f32 %v26, %v48
  %v71 = vadd.f32 %v27, %v49
  %v72 = vadd.f32 %v28, %v50
  %v73 = vadd.f32 %v29, %v51
  %v74 = vadd.f32 %v30, %v52
  %v75 = vadd.f32 %v31, %v53
  %v76 = vadd.f32 %v32, %v54
  %77 = vst [vmem:[%s2] sm:$0xff] %v55
  %78 = vst [vmem:[%s2 + $0x8] sm:$0xff] %v56
  %79 = vst [vmem:[%s2 + $0x10] sm:$0xff] %v57
  %80 = vst [vmem:[%s2 + $0x18] sm:$0xff] %v58
  %81 = vst [vmem:[%s2 + $0x20] sm:$0xff] %v59
  %82 = vst [vmem:[%s2 + $0x28] sm:$0xff] %v60
  %83 = vst [vmem:[%s2 + $0x30] sm:$0xff] %v61
  %84 = vst [vmem:[%s2 + $0x38] sm:$0xff] %v62
  %85 = vst [vmem:[%s2 + $0x40] sm:$0xff] %v63
  %86 = vst [vmem:[%s2 + $0x48] sm:$0xff] %v64
  %87 = vst [vmem:[%s2 + $0x50] sm:$0xff] %v65
  %88 = vst [vmem:[%s2 + $0x58] sm:$0xff] %v66
  %89 = vst [vmem:[%s2 + $0x60] sm:$0xff] %v67
  %90 = vst [vmem:[%s2 + $0x68] sm:$0xff] %v68
  %91 = vst [vmem:[%s2 + $0x70] sm:$0xff] %v69
  %92 = vst [vmem:[%s2 + $0x78] sm:$0xff] %v70
  %93 = vst [vmem:[%s2 + $0x80] sm:$0xff] %v71
  %94 = vst [vmem:[%s2 + $0x88] sm:$0xff] %v72
  %95 = vst [vmem:[%s2 + $0x90] sm:$0xff] %v73
  %96 = vst [vmem:[%s2 + $0x98] sm:$0xff] %v74
  %97 = vst [vmem:[%s2 + $0xa0] sm:$0xff] %v75
  %vm98 = vcmask 457728
  %99 = vst.msk [vmem:[%s2 + $0xa8] sm:$0xff] %vm98, %v76
  // Predicated region
  $region10: #{pallas_add.1} parent=0 // pred_check
    _
  $region11: #{pallas_add.1} parent=0 // pred_check_branch
    %101 = sbr.rel (0) target = $region13
  $region12: #{pallas_add.1} parent=0 // pred_region
    _
  $region13: #{pallas_add.1} parent=0 // pred_fallthru
    _
  // Predicated region
  $region14: #{pallas_add.1} parent=0 // pred_check
    _
  $region15: #{pallas_add.1} parent=0 // pred_check_branch
    %103 = sbr.rel (0) target = $region17
  $region16: #{pallas_add.1} parent=0 // pred_region
    _
  $region17: #{pallas_add.1} parent=0 // pred_fallthru
    _

</llo_original>
